<compile_context>
chip_gen: v5e
topology: v5e:2x2
jax: 0.10.0
libtpu: 0.0.40
codegen_flags: <defaults>
</compile_context>

<pallas_src>
import functools

import jax
import jax.numpy as jnp
from jax.experimental import pallas as pl
from jax.experimental.pallas import tpu as pltpu


def _msa_kernel(x_ref, w_ref, b_ref, o_ref, *, n_heads: int, d_head: int,
                matmul_dtype):
    # x_ref block: (Bt, S, D); w_ref: (H, dh, 3*dh) pre-transposed; b_ref: (H, 3*dh)
    bt, S, D = x_ref.shape
    H, dh = n_heads, d_head

    x = x_ref[...].astype(jnp.float32)                        # (Bt, S, D)
    w = w_ref[...].astype(matmul_dtype)                       # (H, dh, 3*dh)
    bias = b_ref[...].astype(jnp.float32)                     # (H, 3*dh)

    # Head-major view: (H, Bt*S, dh). Head h uses x columns [h*dh:(h+1)*dh],
    # matching the PyTorch slicing.
    xh = x.reshape(bt, S, H, dh)
    xh = jnp.transpose(xh, (2, 0, 1, 3)).reshape(H, bt * S, dh)
    xh = xh.astype(matmul_dtype)

    # Fused per-head QKV projection: one head-batched rank-3 MXU matmul
    # (no block-diagonal zero FLOPs), f32 accumulation, single wide bias add.
    qkv = jnp.einsum('hnd,hde->hne', xh, w,
                     preferred_element_type=jnp.float32) + bias[:, None, :]
    # qkv: (H, Bt*S, 3*dh)

    # Collapse (H, Bt) into one leading batch axis -> rank-3 batched attention.
    q = qkv[:, :, :dh].reshape(H * bt, S, dh)
    k = qkv[:, :, dh:2 * dh].reshape(H * bt, S, dh)
    v = qkv[:, :, 2 * dh:].reshape(H * bt, S, dh)

    scale = 1.0 / (float(dh) ** 0.5)
    s = jnp.einsum('nqd,nkd->nqk',
                   q.astype(matmul_dtype), k.astype(matmul_dtype),
                   preferred_element_type=jnp.float32) * scale  # (H*Bt, S, S)

    # Softmax: stats in f32; EUP approximate reciprocal + one Newton step.
    m = jnp.max(s, axis=-1, keepdims=True)
    p = jnp.exp(s - m)
    l = jnp.sum(p, axis=-1, keepdims=True)
    inv = pl.reciprocal(l, approx=True)
    inv = inv * (2.0 - l * inv)                                 # Newton refine (~exact)
    attn = p * inv

    out = jnp.einsum('nqk,nkd->nqd',
                     attn.astype(matmul_dtype), v.astype(matmul_dtype),
                     preferred_element_type=jnp.float32)        # (H*Bt, S, dh)

    # Reassemble heads and do ONE dense store per grid step.
    out = out.reshape(H, bt, S, dh)
    out = jnp.transpose(out, (1, 2, 0, 3)).reshape(bt, S, D)
    o_ref[...] = out.astype(o_ref.dtype)


def _pack_qkv_params(wq, bq, wk, bk, wv, bv):
    """Pack per-head PyTorch Linear params (y = x @ W.T + b) into a pre-transposed
    (H, dh, 3*dh) weight + (H, 3*dh) bias (no block-diagonal zero padding)."""
    def wt(w):
        return jnp.transpose(w.astype(jnp.float32), (0, 2, 1))   # (H, dh, dh)
    w_packed = jnp.concatenate([wt(wq), wt(wk), wt(wv)], axis=-1)  # (H, dh, 3*dh)
    b_packed = jnp.concatenate(
        [bq.astype(jnp.float32), bk.astype(jnp.float32), bv.astype(jnp.float32)],
        axis=-1)                                                   # (H, 3*dh)
    return w_packed, b_packed


def _pick_block_batch(B, S, D, n_heads, itemsize, vmem_budget_bytes):
    """Largest divisor of B that fits the VMEM budget, capped at B//2 so the
    'parallel' batch grid axis keeps >= 2 steps (v7x megacore sharding)."""
    per_b = (
        2 * S * D * itemsize          # x block (double-buffered DMA)
        + 2 * S * D * itemsize        # out block (double-buffered DMA)
        + S * 3 * D * 4               # qkv intermediate (f32)
        + 2 * n_heads * S * S * 4     # scores + probs (f32)
        + S * D * 4                   # attention output (f32)
    )
    cap = max(1, vmem_budget_bytes // max(per_b, 1))
    cap = min(cap, max(1, B // 2))
    for d in range(min(B, cap), 0, -1):
        if B % d == 0:
            return d, per_b
    return 1, per_b


def msa_pallas(x, wq, bq, wk, bk, wv, bv, *, block_batch=None, matmul_dtype=None,
               vmem_budget_bytes=16 << 20):
    """x: (B, S, D); wq/wk/wv: (n_heads, d_head, d_head); bq/bk/bv: (n_heads, d_head)."""
    B, S, D = x.shape
    n_heads, d_head, _ = wq.shape
    assert n_heads * d_head == D

    w_packed, b_packed = _pack_qkv_params(wq, bq, wk, bk, wv, bv)

    # bf16 matmul operands (f32 accumulation) only pay off at realistic widths;
    # at the tiny demo size keep f32 so accuracy is MXU-exact.
    if matmul_dtype is None:
        matmul_dtype = jnp.bfloat16 if D >= 128 else jnp.float32

    itemsize = jnp.dtype(x.dtype).itemsize
    picked, per_b = _pick_block_batch(B, S, D, n_heads, itemsize, vmem_budget_bytes)
    if block_batch is None:
        block_batch = picked
    assert B % block_batch == 0
    grid = (B // block_batch,)

    weight_bytes = (w_packed.size + b_packed.size) * 4
    needed = block_batch * per_b + 2 * weight_bytes + (1 << 20)
    vmem_limit = int(min(max(2 * needed, 8 << 20), 32 << 20))

    kernel = functools.partial(_msa_kernel, n_heads=n_heads, d_head=d_head,
                               matmul_dtype=matmul_dtype)

    cost = pl.CostEstimate(
        flops=2 * B * S * D * (3 * d_head) + 4 * B * n_heads * S * S * d_head,
        transcendentals=B * n_heads * S * S + B * n_heads * S,   # exp + reciprocal
        bytes_accessed=(x.size + B * S * D) * itemsize + weight_bytes,
    )

    return pl.pallas_call(
        kernel,
        out_shape=jax.ShapeDtypeStruct((B, S, D), x.dtype),
        grid_spec=pltpu.PrefetchScalarGridSpec(
            num_scalar_prefetch=0,
            grid=grid,
            in_specs=[
                pl.BlockSpec((block_batch, S, D), lambda i: (i, 0, 0)),     # x
                pl.BlockSpec((n_heads, d_head, 3 * d_head),
                             lambda i: (0, 0, 0)),                          # packed W_qkv
                pl.BlockSpec((n_heads, 3 * d_head), lambda i: (0, 0)),      # packed bias
            ],
            out_specs=pl.BlockSpec((block_batch, S, D), lambda i: (i, 0, 0)),
        ),
        compiler_params=pltpu.CompilerParams(
            dimension_semantics=("parallel",),
            vmem_limit_bytes=vmem_limit),
        cost_estimate=cost,
    )(x, w_packed, b_packed)


def msa_reference(x, wq, bq, wk, bk, wv, bv):
    """Pure-JAX reference mirroring the PyTorch MSA forward."""
    B, S, D = x.shape
    n_heads, d_head, _ = wq.shape
    outs = []
    for h in range(n_heads):
        seq = x[:, :, h * d_head:(h + 1) * d_head]          # (B, S, d_head)
        q = jnp.einsum('bsd,ed->bse', seq, wq[h]) + bq[h]
        k = jnp.einsum('bsd,ed->bse', seq, wk[h]) + bk[h]
        v = jnp.einsum('bsd,ed->bse', seq, wv[h]) + bv[h]
        s = jnp.einsum('bqd,bkd->bqk', q, k) / (d_head ** 0.5)
        attn = jax.nn.softmax(s, axis=-1)
        outs.append(jnp.einsum('bqk,bkd->bqd', attn, v))
    return jnp.concatenate(outs, axis=-1)


if __name__ == "__main__":
    # Module hyperparams from the script: HIDDEN_D = 8, N_HEADS = 2 -> d_head = 4
    B, S, D, H = 2, 8, 8, 2
    dh = D // H

    key = jax.random.PRNGKey(0)
    ks = jax.random.split(key, 7)
    x = jax.random.normal(ks[0], (B, S, D), dtype=jnp.float32)

    # Deterministic per-head Linear(d_head, d_head) params (PyTorch-style uniform init range).
    bound = 1.0 / (dh ** 0.5)
    wq = jax.random.uniform(ks[1], (H, dh, dh), jnp.float32, -bound, bound)
    wk = jax.random.uniform(ks[2], (H, dh, dh), jnp.float32, -bound, bound)
    wv = jax.random.uniform(ks[3], (H, dh, dh), jnp.float32, -bound, bound)
    bq = jax.random.uniform(ks[4], (H, dh), jnp.float32, -bound, bound)
    bk = jax.random.uniform(ks[5], (H, dh), jnp.float32, -bound, bound)
    bv = jax.random.uniform(ks[6], (H, dh), jnp.float32, -bound, bound)

    out = msa_pallas(x, wq, bq, wk, bk, wv, bv)
    out = jax.block_until_ready(out)

    ref = msa_reference(x, wq, bq, wk, bk, wv, bv)
    assert out.shape == (B, S, D)
    err = float(jnp.max(jnp.abs(out - ref)))
    assert err < 1e-3, f"mismatch vs reference (max abs err = {err})"

    print("KERNEL_OK")
</pallas_src>

<mosaic_0001>
module attributes {stable_mosaic.version = 11 : i64} {
  func.func @_msa_kernel(%arg0: i32, %arg1: memref<1x8x8xf32, #tpu.memory_space<vmem>>, %arg2: memref<2x4x12xf32, #tpu.memory_space<vmem>>, %arg3: memref<2x12xf32, #tpu.memory_space<vmem>>, %arg4: memref<1x8x8xf32, #tpu.memory_space<vmem>>) attributes {dimension_semantics = [#tpu.dimension_semantics<parallel>], iteration_bounds = array<i64: 2>, scalar_prefetch = 0 : i64, scratch_operands = 0 : i64, tpu.core_type = #tpu.core_type<tc>, window_params = [{transform_indices = @transform_0, window_bounds = array<i64: 1, 8, 8>}, {pipeline_mode = #tpu.pipeline_mode<synchronous>, transform_indices = @transform_1, window_bounds = array<i64: 2, 4, 12>}, {pipeline_mode = #tpu.pipeline_mode<synchronous>, transform_indices = @transform_2, window_bounds = array<i64: 2, 12>}, {transform_indices = @transform_3, window_bounds = array<i64: 1, 8, 8>}]} {
    %c0 = arith.constant 0 : index
    %c0_0 = arith.constant 0 : index
    %c0_1 = arith.constant 0 : index
    %0 = vector.load %arg1[%c0, %c0_0, %c0_1] : memref<1x8x8xf32, #tpu.memory_space<vmem>>, vector<1x8x8xf32>
    %c0_2 = arith.constant 0 : index
    %c0_3 = arith.constant 0 : index
    %c0_4 = arith.constant 0 : index
    %1 = vector.load %arg2[%c0_2, %c0_3, %c0_4] : memref<2x4x12xf32, #tpu.memory_space<vmem>>, vector<2x4x12xf32>
    %c0_5 = arith.constant 0 : index
    %c0_6 = arith.constant 0 : index
    %2 = vector.load %arg3[%c0_5, %c0_6] : memref<2x12xf32, #tpu.memory_space<vmem>>, vector<2x12xf32>
    %3 = vector.shape_cast %0 : vector<1x8x8xf32> to vector<1x8x2x4xf32>
    %4 = tpu.transpose %3, [2, 0, 1, 3] : vector<1x8x2x4xf32> -> vector<2x1x8x4xf32>
    %5 = vector.shape_cast %4 : vector<2x1x8x4xf32> to vector<2x8x4xf32>
    "tpu.trace_start"() <{level = 10 : i32, message = "hnd,hde->hne"}> : () -> ()
    %cst = arith.constant dense<0.000000e+00> : vector<2x8x12xf32>
    %6 = tpu.matmul %5, %1, %cst {dimension_numbers = #tpu.dot_dimension_numbers<[2], [1], [1], [2], [0, 0, 0, 1, 1, 2], [0], [0]>} : vector<2x8x4xf32>, vector<2x4x12xf32>, vector<2x8x12xf32> -> vector<2x8x12xf32>
    "tpu.trace_stop"() : () -> ()
    %7 = vector.shape_cast %2 : vector<2x12xf32> to vector<2x1x12xf32>
    %8 = vector.broadcast %7 : vector<2x1x12xf32> to vector<2x8x12xf32>
    %9 = arith.addf %6, %8 : vector<2x8x12xf32>
    %10 = vector.extract_strided_slice %9 {offsets = [0, 0, 0], sizes = [2, 8, 4], strides = [1, 1, 1]} : vector<2x8x12xf32> to vector<2x8x4xf32>
    %11 = vector.extract_strided_slice %9 {offsets = [0, 0, 4], sizes = [2, 8, 4], strides = [1, 1, 1]} : vector<2x8x12xf32> to vector<2x8x4xf32>
    %12 = vector.extract_strided_slice %9 {offsets = [0, 0, 8], sizes = [2, 8, 4], strides = [1, 1, 1]} : vector<2x8x12xf32> to vector<2x8x4xf32>
    "tpu.trace_start"() <{level = 10 : i32, message = "nqd,nkd->nqk"}> : () -> ()
    %cst_7 = arith.constant dense<0.000000e+00> : vector<2x8x8xf32>
    %13 = tpu.matmul %10, %11, %cst_7 {dimension_numbers = #tpu.dot_dimension_numbers<[2], [2], [1], [1], [0, 0, 0, 1, 1, 1], [0], [0]>} : vector<2x8x4xf32>, vector<2x8x4xf32>, vector<2x8x8xf32> -> vector<2x8x8xf32>
    "tpu.trace_stop"() : () -> ()
    %cst_8 = arith.constant 5.000000e-01 : f32
    %14 = vector.broadcast %cst_8 : f32 to vector<2x8x8xf32>
    %15 = arith.mulf %13, %14 : vector<2x8x8xf32>
    %cst_9 = arith.constant dense<0xFF800000> : vector<2x8xf32>
    %16 = vector.multi_reduction <maximumf>, %15, %cst_9 [2] : vector<2x8x8xf32> to vector<2x8xf32>
    %17 = vector.shape_cast %16 : vector<2x8xf32> to vector<2x8x1xf32>
    %18 = vector.broadcast %17 : vector<2x8x1xf32> to vector<2x8x8xf32>
    %19 = arith.subf %15, %18 : vector<2x8x8xf32>
    %20 = math.exp %19 : vector<2x8x8xf32>
    %cst_10 = arith.constant dense<0.000000e+00> : vector<2x8xf32>
    %21 = vector.multi_reduction <add>, %20, %cst_10 [2] : vector<2x8x8xf32> to vector<2x8xf32>
    %22 = vector.shape_cast %21 : vector<2x8xf32> to vector<2x8x1xf32>
    %23 = tpu.reciprocal %22 {approx = true} : vector<2x8x1xf32> -> vector<2x8x1xf32>
    %24 = arith.mulf %22, %23 : vector<2x8x1xf32>
    %cst_11 = arith.constant 2.000000e+00 : f32
    %25 = vector.broadcast %cst_11 : f32 to vector<2x8x1xf32>
    %26 = arith.subf %25, %24 : vector<2x8x1xf32>
    %27 = arith.mulf %23, %26 : vector<2x8x1xf32>
    %28 = vector.broadcast %27 : vector<2x8x1xf32> to vector<2x8x8xf32>
    %29 = arith.mulf %20, %28 : vector<2x8x8xf32>
    "tpu.trace_start"() <{level = 10 : i32, message = "nqk,nkd->nqd"}> : () -> ()
    %cst_12 = arith.constant dense<0.000000e+00> : vector<2x8x4xf32>
    %30 = tpu.matmul %29, %12, %cst_12 {dimension_numbers = #tpu.dot_dimension_numbers<[2], [1], [1], [2], [0, 0, 0, 1, 1, 2], [0], [0]>} : vector<2x8x8xf32>, vector<2x8x4xf32>, vector<2x8x4xf32> -> vector<2x8x4xf32>
    "tpu.trace_stop"() : () -> ()
    %31 = vector.shape_cast %30 : vector<2x8x4xf32> to vector<2x1x8x4xf32>
    %32 = tpu.transpose %31, [1, 2, 0, 3] : vector<2x1x8x4xf32> -> vector<1x8x2x4xf32>
    %33 = vector.shape_cast %32 : vector<1x8x2x4xf32> to vector<1x8x8xf32>
    %c0_13 = arith.constant 0 : index
    %c0_14 = arith.constant 0 : index
    %c0_15 = arith.constant 0 : index
    %34 = vector.load %arg4[%c0_13, %c0_14, %c0_15] : memref<1x8x8xf32, #tpu.memory_space<vmem>>, vector<1x8x8xf32>
    tpu.vector_store %arg4[%c0_13, %c0_14, %c0_15], %33 {strides = array<i32>} : memref<1x8x8xf32, #tpu.memory_space<vmem>>, vector<1x8x8xf32>,
    return
  }
  func.func @transform_0(%arg0: i32) -> (i32, i32, i32) {
    %c0_i32 = arith.constant 0 : i32
    %c0_i32_0 = arith.constant 0 : i32
    %c0_i32_1 = arith.constant 0 : i32
    return %arg0, %c0_i32, %c0_i32_0 : i32, i32, i32
  }
  func.func @transform_1(%arg0: i32) -> (i32, i32, i32) {
    %c0_i32 = arith.constant 0 : i32
    %c0_i32_0 = arith.constant 0 : i32
    %c0_i32_1 = arith.constant 0 : i32
    %c0_i32_2 = arith.constant 0 : i32
    return %c0_i32, %c0_i32_0, %c0_i32_1 : i32, i32, i32
  }
  func.func @transform_2(%arg0: i32) -> (i32, i32) {
    %c0_i32 = arith.constant 0 : i32
    %c0_i32_0 = arith.constant 0 : i32
    %c0_i32_1 = arith.constant 0 : i32
    return %c0_i32, %c0_i32_0 : i32, i32
  }
  func.func @transform_3(%arg0: i32) -> (i32, i32, i32) {
    %c0_i32 = arith.constant 0 : i32
    %c0_i32_0 = arith.constant 0 : i32
    %c0_i32_1 = arith.constant 0 : i32
    return %arg0, %c0_i32, %c0_i32_0 : i32, i32, i32
  }
}

</mosaic_0001>

<llo_original>
// kernel: tpu_custom_call.1
$region0: #{tpu_custom_call.1}
  #allocation0 [shape = 'u32[]', space=smem, size = 0x4, offset = 0x4, fixed_abs, tag = 'smem constant byte address 0x4 - core index']
  #allocation1 [shape = 'u32[72,128]{1,0:T(1,128)}', space=vmem, size = 0x9000, scoped, tag = 'internal scratch']
  %s0 = inlined_call_operand.hbm [shape: f32[2,8,8], index: 0, kind: input, shape index: {}]
  %s1 = inlined_call_operand.hbm [shape: f32[2,4,12], index: 1, kind: input, shape index: {}]
  %s2 = inlined_call_operand.hbm [shape: f32[2,12], index: 2, kind: input, shape index: {}]
  %s3 = inlined_call_operand.hbm [shape: f32[2,8,8], index: 3, kind: output, shape index: {}]
  %s4 = sld [smem:[#allocation0]]
  $region57: #{tpu_custom_call.1} parent=0
    _
  %s6 = ssub.s32 1, %s4
  %s7 = scalar_select 0, %s6, %s4
  $region1: #{tpu_custom_call.1} parent=0
    #allocation2 [shape = 'u8[8192]{0}', space=vmem, size = 0x2000, scoped, tag = 'input window, operand 0']
    #allocation3 [shape = 's32[2]{0}', space=sflag, size = 0x8, scoped, tag = 'scoped memory for tpu_custom_call.1']
    #allocation4 [shape = 's32[2]{0}', space=sflag, size = 0x8, scoped, tag = 'scoped memory for tpu_custom_call.1']
    #allocation5 [shape = 'u8[4096]{0}', space=vmem, size = 0x1000, scoped, tag = 'input window, operand 1, single buffered']
    #allocation6 [shape = 's32[1]{0}', space=sflag, size = 0x4, scoped, tag = 'scoped memory for tpu_custom_call.1']
    #allocation7 [shape = 'u8[1024]{0}', space=vmem, size = 0x400, scoped, tag = 'input window, operand 2, single buffered']
    #allocation8 [shape = 'u8[8192]{0}', space=vmem, size = 0x2000, scoped, tag = 'output window, operand 0']
    %8 = vsyncpa [#allocation3], 0
    %s9 = scalar_lea.sflag [#allocation3], 1
    %10 = vsyncpa %s9, 0
    %11 = vsyncpa [#allocation6], 0
    %12 = vsyncpa [#allocation4], 0
    %s13 = scalar_lea.sflag [#allocation4], 1
    %14 = vsyncpa %s13, 0
    loop: start=0, step=1, limit=4
    $region2: #{tpu_custom_call.1} parent=1 // loop_pre_header
      _
    $region3: #{tpu_custom_call.1} parent=1 // loop_header
      %s16 = sphi 0, %s20
      %p17 = scmp.ge.s32.totalorder %s16, 4
      %s26 = sphi 0, %s28
      %s29 = sphi 0, %s26
      %s30 = sphi 0, %s29
      %s46 = sphi 0, %s30
      %s50 = sphi 0, %s50
      %s52 = sphi 0, %s50
      %s53 = sphi 0, %s52
      %s67 = sphi 0, %s53
      %s71 = sphi 0, %s71
      %s73 = sphi 0, %s71
      %s74 = sphi 0, %s73
      %s88 = sphi 0, %s74
      %s94 = sphi 0, %s96
      %s97 = sphi 0, %s94
      %s98 = sphi 0, %s97
      %s114 = sphi 0, %s98
    $region4: #{tpu_custom_call.1} parent=1 // loop_header_branch
      %19 = sbr.rel (%p17) target = $region8
    $region5: #{tpu_custom_call.1} parent=1 // loop_body
      %s21 = ssub.s32 %s16, 1
      %s22 = ssub.s32 %s16, 2
      %s23 = sadd.s32 %s16, 1
      %s24 = ssub.s32 %s16, %s23
      %p25 = scmp.eq.s32.totalorder %s24, 0
      %s27 = sadd.s32 %s26, 1
      %s28 = scalar_select %p25, %s26, %s27
      %p31 = pneg %p25
      %p32 = scmp.eq.s32.totalorder %s16, 1
      %p33 = por %p31, %p32
      %p34 = scmp.ne.s32.totalorder %s26, %s29
      %p35 = scmp.eq.s32.totalorder %s16, 0
      %p36 = por %p34, %p35
      %p37 = scmp.ne.s32.totalorder %s26, %s29
      %p38 = scmp.eq.s32.totalorder %s21, 1
      %p39 = por %p37, %p38
      %p40 = scmp.ne.s32.totalorder %s29, %s30
      %p41 = scmp.eq.s32.totalorder %s21, 0
      %p42 = por %p40, %p41
      %p43 = scmp.ne.s32.totalorder %s29, %s30
      %p44 = scmp.eq.s32.totalorder %s22, 1
      %p45 = por %p43, %p44
      %p47 = scmp.ne.s32.totalorder %s30, %s46
      %p48 = scmp.eq.s32.totalorder %s22, 0
      %p49 = por %p47, %p48
      %s51 = sadd.s32 %s50, 1
      %p54 = scmp.eq.s32.totalorder %s16, 1
      %p55 = scmp.ne.s32.totalorder %s50, %s52
      %p56 = scmp.eq.s32.totalorder %s16, 0
      %p57 = por %p55, %p56
      %p58 = scmp.ne.s32.totalorder %s50, %s52
      %p59 = scmp.eq.s32.totalorder %s21, 1
      %p60 = por %p58, %p59
      %p61 = scmp.ne.s32.totalorder %s52, %s53
      %p62 = scmp.eq.s32.totalorder %s21, 0
      %p63 = por %p61, %p62
      %p64 = scmp.ne.s32.totalorder %s52, %s53
      %p65 = scmp.eq.s32.totalorder %s22, 1
      %p66 = por %p64, %p65
      %p68 = scmp.ne.s32.totalorder %s53, %s67
      %p69 = scmp.eq.s32.totalorder %s22, 0
      %p70 = por %p68, %p69
      %s72 = sadd.s32 %s71, 1
      %p75 = scmp.eq.s32.totalorder %s16, 1
      %p76 = scmp.ne.s32.totalorder %s71, %s73
      %p77 = scmp.eq.s32.totalorder %s16, 0
      %p78 = por %p76, %p77
      %p79 = scmp.ne.s32.totalorder %s71, %s73
      %p80 = scmp.eq.s32.totalorder %s21, 1
      %p81 = por %p79, %p80
      %p82 = scmp.ne.s32.totalorder %s73, %s74
      %p83 = scmp.eq.s32.totalorder %s21, 0
      %p84 = por %p82, %p83
      %p85 = scmp.ne.s32.totalorder %s73, %s74
      %p86 = scmp.eq.s32.totalorder %s22, 1
      %p87 = por %p85, %p86
      %p89 = scmp.ne.s32.totalorder %s74, %s88
      %p90 = scmp.eq.s32.totalorder %s22, 0
      %p91 = por %p89, %p90
      %s92 = ssub.s32 %s16, %s23
      %p93 = scmp.eq.s32.totalorder %s92, 0
      %s95 = sadd.s32 %s94, 1
      %s96 = scalar_select %p93, %s94, %s95
      %p99 = pneg %p93
      %p100 = scmp.eq.s32.totalorder %s16, 1
      %p101 = por %p99, %p100
      %p102 = scmp.ne.s32.totalorder %s94, %s97
      %p103 = scmp.eq.s32.totalorder %s16, 0
      %p104 = por %p102, %p103
      %p105 = scmp.ne.s32.totalorder %s94, %s97
      %p106 = scmp.eq.s32.totalorder %s21, 1
      %p107 = por %p105, %p106
      %p108 = scmp.ne.s32.totalorder %s97, %s98
      %p109 = scmp.eq.s32.totalorder %s21, 0
      %p110 = por %p108, %p109
      %p111 = scmp.ne.s32.totalorder %s97, %s98
      %p112 = scmp.eq.s32.totalorder %s22, 1
      %p113 = por %p111, %p112
      %p115 = scmp.ne.s32.totalorder %s98, %s114
      %p116 = scmp.eq.s32.totalorder %s22, 0
      %p117 = por %p115, %p116
      %p118 = scmp.le.s32.totalorder 1, %s16
      %p119 = scmp.lt.s32.totalorder %s16, 3
      %p120 = pnand %p118, %p119
      %p121 = pneg %p120
      // Predicated region
      $region9: #{tpu_custom_call.1} parent=5 // pred_check
        _
      $region10: #{tpu_custom_call.1} parent=5 // pred_check_branch
        %123 = sbr.rel (%p120) target = $region12
      $region11: #{tpu_custom_call.1} parent=5 // pred_region
        %s124 = ssub.s32 %s16, 1
        // Predicated region
        $region13: #{tpu_custom_call.1} parent=11 // pred_check
          %p125 = pneg %p63
        $region14: #{tpu_custom_call.1} parent=11 // pred_check_branch
          %127 = sbr.rel (%p125) target = $region16
        $region15: #{tpu_custom_call.1} parent=11 // pred_region
          %129 = vsyncadd [#allocation6], 0
          %s130 = sshll.u32 %s1, 4
          %s131 = int_to_ptr.hbm [resolvable:$true] %s130
          %s132 = sshll.u32 [#allocation5], 4
          %s133 = int_to_ptr.vmem [resolvable:$true] %s132
          %138 = dma.hbm_to_vmem [thread:$0]  %s131, 128, %s133, [#allocation6], 64, 64, 4
        $region16: #{tpu_custom_call.1} parent=11 // pred_fallthru
          _
        // Predicated region
        $region17: #{tpu_custom_call.1} parent=11 // pred_check
          %p139 = pneg %p84
        $region18: #{tpu_custom_call.1} parent=11 // pred_check_branch
          %141 = sbr.rel (%p139) target = $region20
        $region19: #{tpu_custom_call.1} parent=11 // pred_region
          %143 = vsyncadd [#allocation6], 0
          %s145 = sshll.u32 %s2, 4
          %s146 = int_to_ptr.hbm [resolvable:$true] %s145
          %s147 = sshll.u32 [#allocation7], 4
          %s148 = int_to_ptr.vmem [resolvable:$true] %s147
          %150 = dma.hbm_to_vmem [thread:$0]  %s146, 32, %s148, [#allocation6]
        $region20: #{tpu_custom_call.1} parent=11 // pred_fallthru
          _
      $region12: #{tpu_custom_call.1} parent=5 // pred_fallthru
        _
      %p151 = scmp.lt.s32.totalorder %s16, 2
      // Predicated region
      $region21: #{tpu_custom_call.1} parent=5 // pred_check
        %p152 = pneg %p151
      $region22: #{tpu_custom_call.1} parent=5 // pred_check_branch
        %154 = sbr.rel (%p152) target = $region24
      $region23: #{tpu_custom_call.1} parent=5 // pred_region
        // Predicated region
        $region25: #{tpu_custom_call.1} parent=23 // pred_check
          %p155 = pneg %p36
        $region26: #{tpu_custom_call.1} parent=23 // pred_check_branch
          %157 = sbr.rel (%p155) target = $region28
        $region27: #{tpu_custom_call.1} parent=23 // pred_region
          %s158 = sand.u32 %s26, 1
          %s159 = scalar_lea.sflag [#allocation3], %s158
          %s160 = sand.u32 %s26, 1
          %s161 = smul.addr %s160, 8
          %s162 = scalar_lea.vmem [#allocation2], %s161
          %164 = vsyncadd %s159, 0
          %s165 = smul.addr %s16, 8
          %s166 = scalar_lea.hbm %s0, %s165
          %s168 = sshll.u32 %s166, 4
          %s169 = int_to_ptr.hbm [resolvable:$true] %s168
          %s170 = sshll.u32 %s162, 4
          %s171 = int_to_ptr.vmem [resolvable:$true] %s170
          %173 = dma.hbm_to_vmem [thread:$0]  %s169, 128, %s171, %s159
        $region28: #{tpu_custom_call.1} parent=23 // pred_fallthru
          _
      $region24: #{tpu_custom_call.1} parent=5 // pred_fallthru
        _
      %p174 = scmp.le.s32.totalorder 1, %s16
      %p175 = scmp.lt.s32.totalorder %s16, 3
      %p176 = pnand %p174, %p175
      %p177 = pneg %p176
      // Predicated region
      $region29: #{tpu_custom_call.1} parent=5 // pred_check
        _
      $region30: #{tpu_custom_call.1} parent=5 // pred_check_branch
        %179 = sbr.rel (%p176) target = $region32
      $region31: #{tpu_custom_call.1} parent=5 // pred_region
        %s180 = ssub.s32 %s16, 1
        %s181 = sand.u32 %s29, 1
        %s182 = scalar_lea.sflag [#allocation3], %s181
        %s183 = sand.u32 %s29, 1
        %s184 = smul.addr %s183, 8
        %s185 = scalar_lea.vmem [#allocation2], %s184
        // Predicated region
        $region33: #{tpu_custom_call.1} parent=31 // pred_check
          %p186 = pneg %p42
        $region34: #{tpu_custom_call.1} parent=31 // pred_check_branch
          %188 = sbr.rel (%p186) target = $region36
        $region35: #{tpu_custom_call.1} parent=31 // pred_region
          %190 = dma.done %s182, 128
        $region36: #{tpu_custom_call.1} parent=31 // pred_fallthru
          _
        // Predicated region
        $region37: #{tpu_custom_call.1} parent=31 // pred_check
          %p191 = pneg %p63
        $region38: #{tpu_custom_call.1} parent=31 // pred_check_branch
          %193 = sbr.rel (%p191) target = $region40
        $region39: #{tpu_custom_call.1} parent=31 // pred_region
          %195 = dma.done [#allocation6], 128
        $region40: #{tpu_custom_call.1} parent=31 // pred_fallthru
          _
        // Predicated region
        $region41: #{tpu_custom_call.1} parent=31 // pred_check
          %p196 = pneg %p84
        $region42: #{tpu_custom_call.1} parent=31 // pred_check_branch
          %198 = sbr.rel (%p196) target = $region44
        $region43: #{tpu_custom_call.1} parent=31 // pred_region
          %200 = dma.done [#allocation6], 32
        $region44: #{tpu_custom_call.1} parent=31 // pred_fallthru
          _
        %s201 = sand.u32 %s29, 1
        %s202 = scalar_lea.sflag [#allocation3], %s201
        %s203 = sand.u32 %s29, 1
        %s204 = smul.addr %s203, 8
        %s205 = scalar_lea.vmem [#allocation2], %s204
        %p206 = pneg %p42
        %p207 = pneg %p39
        %p208 = pneg %p63
        %p209 = pneg %p60
        %p210 = pneg %p84
        %p211 = pneg %p81
        %p212 = pneg %p110
        %p213 = pneg %p107
        %s214 = sand.u32 %s97, 1
        %s215 = scalar_lea.sflag [#allocation4], %s214
        %s216 = sand.u32 %s97, 1
        %s217 = smul.addr %s216, 8
        %s218 = scalar_lea.vmem [#allocation8], %s217
        %v219 = vld [vmem:[%s185] sm:$0xff]
        %v220 = vld [vmem:[#allocation5] sm:$0xf]
        %v221 = vld [vmem:[#allocation5 + $0x4] sm:$0xf]
        %v222 = vld [vmem:[#allocation7] sm:$0x3]
        %224 = vrot.lane.b32.xlu0 %v219, 124
        %v225 = vpop.permute.xlu0 %224
        %v227 = vrot.slane %v219, 4
        %vm228 = vcmask 1047556
        %v229 = vsel %vm228, 0.0, %v227
        %v231 = vunpack.c.l.s4 1983009808
        %v232 = vunpack.c.0.s8 %v231
        %v233 = vperm.slane %v219, %v232
        %v235 = vunpack.c.l.s4 1983009808
        %v236 = vunpack.c.0.s8 %v235
        %v237 = vperm.slane %v229, %v236
        %v238 = vrot.slane %v225, 4
        %v239 = vsel %vm228, 0.0, %v238
        %v241 = vunpack.c.l.s4 1983009808
        %v242 = vunpack.c.0.s8 %v241
        %v243 = vperm.slane %v225, %v242
        %v245 = vunpack.c.l.s4 1983009808
        %v246 = vunpack.c.0.s8 %v245
        %v247 = vperm.slane %v239, %v246
        %v248 = vrot.slane %v243, 4
        %v249 = vsel %vm228, %v248, %v233
        %v250 = vrot.slane %v233, 4
        %v251 = vsel %vm228, %v243, %v250
        %v253 = vunpack.c.l.s4 1934713408
        %v254 = vunpack.c.0.s8 %v253
        %v255 = vperm.slane %v249, %v254
        %v257 = vunpack.c.l.s4 1934713408
        %v258 = vunpack.c.0.s8 %v257
        %v259 = vperm.slane %v251, %v258
        %v260 = vrot.slane %v247, 4
        %v261 = vsel %vm228, %v260, %v237
        %v262 = vrot.slane %v237, 4
        %v263 = vsel %vm228, %v247, %v262
        %v265 = vunpack.c.l.s4 1934713408
        %v266 = vunpack.c.0.s8 %v265
        %v267 = vperm.slane %v261, %v266
        %v269 = vunpack.c.l.s4 1934713408
        %v270 = vunpack.c.0.s8 %v269
        %v271 = vperm.slane %v263, %v270
        %v272 = vrot.slane %v255, 4
        %v273 = vsel %vm228, 0.0, %v272
        %v274 = vrot.slane %v259, 4
        %v275 = vsel %vm228, 0.0, %v274
        %v276 = vrot.slane %v267, 4
        %v277 = vsel %vm228, 0.0, %v276
        %v278 = vrot.slane %v271, 4
        %v279 = vsel %vm228, 0.0, %v278
        %v280 = vsel %vm228, %v274, %v255
        %v282 = vunpack.c.l.s4 1983009808
        %v283 = vunpack.c.0.s8 %v282
        %v284 = vperm.slane %v280, %v283
        %v285 = vrot.slane %v275, 4
        %v286 = vsel %vm228, %v285, %v273
        %v288 = vunpack.c.l.s4 1983009808
        %v289 = vunpack.c.0.s8 %v288
        %v290 = vperm.slane %v286, %v289
        %v291 = vsel %vm228, %v278, %v267
        %v293 = vunpack.c.l.s4 1983009808
        %v294 = vunpack.c.0.s8 %v293
        %v295 = vperm.slane %v291, %v294
        %v296 = vrot.slane %v279, 4
        %v297 = vsel %vm228, %v296, %v277
        %v299 = vunpack.c.l.s4 1983009808
        %v300 = vunpack.c.0.s8 %v299
        %v301 = vperm.slane %v297, %v300
        %v302 = vrot.slane %v290, 4
        %v303 = vsel %vm228, %v302, %v284
        %v305 = vunpack.c.l.s4 1934713408
        %v306 = vunpack.c.0.s8 %v305
        %v307 = vperm.slane %v303, %v306
        %v308 = vrot.slane %v301, 4
        %v309 = vsel %vm228, %v308, %v295
        %v311 = vunpack.c.l.s4 1934713408
        %v312 = vunpack.c.0.s8 %v311
        %v313 = vperm.slane %v309, %v312
        %v314 = vrot.slane %v313, 4
        %v315 = vsel %vm228, %v314, %v307
        %v316 = vrot.slane %v307, 4
        %v317 = vsel %vm228, %v313, %v316
        %v319 = vrot.slane %v222, 1
        %v320 = vperm.slane %v222, 0
        %v321 = vperm.slane %v319, 0
        %vm324 = vcmask 31744
        %v326 = vsel %vm324, %v315, 0
        %vm328 = vcmask 1043456
        %v330 = vsel %vm328, %v220, 0
        %332 = vmatpush.msra.mxu0 0.0
        %333 = vmatpush.msra.mxu0 0.0
        %334 = vmatpush.msra.mxu0 0.0
        %335 = vmatpush.msra.mxu0 0.0
        %336 = vmatpush.msra.mxu0 0.0
        %337 = vmatpush.msra.mxu0 0.0
        %338 = vmatpush.msra.mxu0 0.0
        %339 = vmatpush.msra.mxu0 0.0
        %340 = vmatpush.msra.mxu0 0.0
        %341 = vmatpush.msra.mxu0 0.0
        %342 = vmatpush.msra.mxu0 0.0
        %343 = vmatpush.msra.mxu0 0.0
        %344 = vmatpush.msra.mxu0 0.0
        %345 = vmatpush.msra.mxu0 0.0
        %346 = vmatpush.msra.mxu0 0.0
        %347 = vmatpush.msra.mxu0 %v330
        %348 = vmatmul.f32.gmra.mxu0 %v326
        %v349 = vpop.f32.mrf.mxu0
        %v350 = vadd.f32 %v320, %v349
        %351 = vdwg.mxu0
        %v353 = vsel %vm324, %v317, 0
        %v356 = vsel %vm328, %v221, 0
        %358 = vmatpush.msra.mxu0 0.0
        %359 = vmatpush.msra.mxu0 0.0
        %360 = vmatpush.msra.mxu0 0.0
        %361 = vmatpush.msra.mxu0 0.0
        %362 = vmatpush.msra.mxu0 0.0
        %363 = vmatpush.msra.mxu0 0.0
        %364 = vmatpush.msra.mxu0 0.0
        %365 = vmatpush.msra.mxu0 0.0
        %366 = vmatpush.msra.mxu0 0.0
        %367 = vmatpush.msra.mxu0 0.0
        %368 = vmatpush.msra.mxu0 0.0
        %369 = vmatpush.msra.mxu0 0.0
        %370 = vmatpush.msra.mxu0 0.0
        %371 = vmatpush.msra.mxu0 0.0
        %372 = vmatpush.msra.mxu0 0.0
        %373 = vmatpush.msra.mxu0 %v356
        %374 = vmatmul.f32.gmra.mxu0 %v353
        %v375 = vpop.f32.mrf.mxu0
        %v376 = vadd.f32 %v321, %v375
        %377 = vdwg.mxu0
        %379 = vrot.lane.b32.xlu0 %v350, 124
        %v380 = vpop.permute.xlu0 %379
        %v381 = vsel %vm324, %v350, 0
        %v383 = vsel %vm324, %v380, 0
        %385 = vmatpush.xpose.msra.mxu0 0.0
        %386 = vmatpush.xpose.msra.mxu0 0.0
        %387 = vmatpush.xpose.msra.mxu0 0.0
        %388 = vmatpush.xpose.msra.mxu0 0.0
        %389 = vmatpush.xpose.msra.mxu0 0.0
        %390 = vmatpush.xpose.msra.mxu0 0.0
        %391 = vmatpush.xpose.msra.mxu0 0.0
        %392 = vmatpush.xpose.msra.mxu0 0.0
        %393 = vmatpush.xpose.msra.mxu0 0.0
        %394 = vmatpush.xpose.msra.mxu0 0.0
        %395 = vmatpush.xpose.msra.mxu0 0.0
        %396 = vmatpush.xpose.msra.mxu0 0.0
        %397 = vmatpush.xpose.msra.mxu0 0.0
        %398 = vmatpush.xpose.msra.mxu0 0.0
        %399 = vmatpush.xpose.msra.mxu0 0.0
        %400 = vmatpush.xpose.msra.mxu0 %v383
        %401 = vmatmul.f32.gmra.mxu0 %v381
        %v402 = vpop.f32.mrf.mxu0
        %v403 = vadd.f32 0.0, %v402
        %404 = vdwg.mxu0
        %406 = vrot.lane.b32.xlu0 %v376, 124
        %v407 = vpop.permute.xlu0 %406
        %v408 = vsel %vm324, %v376, 0
        %v410 = vsel %vm324, %v407, 0
        %412 = vmatpush.xpose.msra.mxu0 0.0
        %413 = vmatpush.xpose.msra.mxu0 0.0
        %414 = vmatpush.xpose.msra.mxu0 0.0
        %415 = vmatpush.xpose.msra.mxu0 0.0
        %416 = vmatpush.xpose.msra.mxu0 0.0
        %417 = vmatpush.xpose.msra.mxu0 0.0
        %418 = vmatpush.xpose.msra.mxu0 0.0
        %419 = vmatpush.xpose.msra.mxu0 0.0
        %420 = vmatpush.xpose.msra.mxu0 0.0
        %421 = vmatpush.xpose.msra.mxu0 0.0
        %422 = vmatpush.xpose.msra.mxu0 0.0
        %423 = vmatpush.xpose.msra.mxu0 0.0
        %424 = vmatpush.xpose.msra.mxu0 0.0
        %425 = vmatpush.xpose.msra.mxu0 0.0
        %426 = vmatpush.xpose.msra.mxu0 0.0
        %427 = vmatpush.xpose.msra.mxu0 %v410
        %428 = vmatmul.f32.gmra.mxu0 %v408
        %v429 = vpop.f32.mrf.mxu0
        %v430 = vadd.f32 0.0, %v429
        %431 = vdwg.mxu0
        %v432 = vmul.f32 %v403, 0.5
        %v433 = vmul.f32 %v430, 0.5
        %vm434 = vcmask 64512
        %v435 = vsel %vm434, %v432, -inf
        %436 = vmax.xlane.f32.xlu0 %v435
        %v437 = vpop.xlane.xlu0 %436
        %v438 = vsel %vm434, %v433, -inf
        %439 = vmax.xlane.f32.xlu0 %v438
        %v440 = vpop.xlane.xlu0 %439
        %v441 = vsub.f32 %v432, %v437
        %v442 = vsub.f32 %v433, %v440
        %v443 = vmul.f32 %v441, 1.442695
        %v444 = vpow.pop %v443
        %v445 = vmul.f32 %v442, 1.442695
        %v446 = vpow.pop %v445
        %v447 = vsel %vm434, %v444, 0.0
        %448 = vadd.xlane.f32.xlu0 %v447
        %v449 = vpop.xlane.xlu0 %448
        %v450 = vsel %vm434, %v446, 0.0
        %451 = vadd.xlane.f32.xlu0 %v450
        %v452 = vpop.xlane.xlu0 %451
        %v453 = vrcp.pop %v449
        %v454 = vrcp.pop %v452
        %v455 = vmul.f32 %v449, %v453
        %v456 = vmul.f32 %v452, %v454
        %v457 = vsub.f32 2.0, %v455
        %v458 = vsub.f32 2.0, %v456
        %v459 = vmul.f32 %v453, %v457
        %v460 = vmul.f32 %v454, %v458
        %v461 = vmul.f32 %v444, %v459
        %v462 = vmul.f32 %v446, %v460
        %463 = vrot.lane.b32.xlu0 %v350, 120
        %v464 = vpop.permute.xlu0 %463
        %v467 = vsel %vm434, %v461, 0
        %469 = vmatpush.msra.mxu0 0.0
        %470 = vmatpush.msra.mxu0 0.0
        %471 = vmatpush.msra.mxu0 0.0
        %472 = vmatpush.msra.mxu0 0.0
        %473 = vmatpush.msra.mxu0 0.0
        %474 = vmatpush.msra.mxu0 0.0
        %475 = vmatpush.msra.mxu0 0.0
        %476 = vmatpush.msra.mxu0 0.0
        %477 = vmatpush.msra.mxu0 0.0
        %478 = vmatpush.msra.mxu0 0.0
        %479 = vmatpush.msra.mxu0 0.0
        %480 = vmatpush.msra.mxu0 0.0
        %481 = vmatpush.msra.mxu0 0.0
        %482 = vmatpush.msra.mxu0 0.0
        %483 = vmatpush.msra.mxu0 0.0
        %484 = vmatpush.msra.mxu0 %v464
        %485 = vmatmul.f32.gmra.mxu0 %v467
        %v486 = vpop.f32.mrf.mxu0
        %v487 = vadd.f32 0.0, %v486
        %488 = vdwg.mxu0
        %489 = vrot.lane.b32.xlu0 %v376, 120
        %v490 = vpop.permute.xlu0 %489
        %v493 = vsel %vm434, %v462, 0
        %495 = vmatpush.msra.mxu0 0.0
        %496 = vmatpush.msra.mxu0 0.0
        %497 = vmatpush.msra.mxu0 0.0
        %498 = vmatpush.msra.mxu0 0.0
        %499 = vmatpush.msra.mxu0 0.0
        %500 = vmatpush.msra.mxu0 0.0
        %501 = vmatpush.msra.mxu0 0.0
        %502 = vmatpush.msra.mxu0 0.0
        %503 = vmatpush.msra.mxu0 0.0
        %504 = vmatpush.msra.mxu0 0.0
        %505 = vmatpush.msra.mxu0 0.0
        %506 = vmatpush.msra.mxu0 0.0
        %507 = vmatpush.msra.mxu0 0.0
        %508 = vmatpush.msra.mxu0 0.0
        %509 = vmatpush.msra.mxu0 0.0
        %510 = vmatpush.msra.mxu0 %v490
        %511 = vmatmul.f32.gmra.mxu0 %v493
        %v512 = vpop.f32.mrf.mxu0
        %v513 = vadd.f32 0.0, %v512
        %514 = vdwg.mxu0
        %v515 = vrot.slane %v487, 4
        %v516 = vsel %vm228, 0.0, %v515
        %v518 = vunpack.c.l.s4 1983009808
        %v519 = vunpack.c.0.s8 %v518
        %v520 = vperm.slane %v487, %v519
        %v522 = vunpack.c.l.s4 1983009808
        %v523 = vunpack.c.0.s8 %v522
        %v524 = vperm.slane %v516, %v523
        %v525 = vrot.slane %v513, 4
        %v526 = vsel %vm228, 0.0, %v525
        %v528 = vunpack.c.l.s4 1983009808
        %v529 = vunpack.c.0.s8 %v528
        %v530 = vperm.slane %v513, %v529
        %v532 = vunpack.c.l.s4 1983009808
        %v533 = vunpack.c.0.s8 %v532
        %v534 = vperm.slane %v526, %v533
        %v535 = vrot.slane %v530, 4
        %v536 = vsel %vm228, %v535, %v520
        %v537 = vrot.slane %v520, 4
        %v538 = vsel %vm228, %v530, %v537
        %v540 = vunpack.c.l.s4 1934713408
        %v541 = vunpack.c.0.s8 %v540
        %v542 = vperm.slane %v536, %v541
        %v544 = vunpack.c.l.s4 1934713408
        %v545 = vunpack.c.0.s8 %v544
        %v546 = vperm.slane %v538, %v545
        %v547 = vrot.slane %v534, 4
        %v548 = vsel %vm228, %v547, %v524
        %v549 = vrot.slane %v524, 4
        %v550 = vsel %vm228, %v534, %v549
        %v552 = vunpack.c.l.s4 1934713408
        %v553 = vunpack.c.0.s8 %v552
        %v554 = vperm.slane %v548, %v553
        %v556 = vunpack.c.l.s4 1934713408
        %v557 = vunpack.c.0.s8 %v556
        %v558 = vperm.slane %v550, %v557
        %v559 = vrot.slane %v542, 4
        %v560 = vsel %vm228, 0.0, %v559
        %v561 = vrot.slane %v546, 4
        %v562 = vsel %vm228, 0.0, %v561
        %v563 = vrot.slane %v554, 4
        %v564 = vsel %vm228, 0.0, %v563
        %v565 = vrot.slane %v558, 4
        %v566 = vsel %vm228, 0.0, %v565
        %v567 = vsel %vm228, %v561, %v542
        %v569 = vunpack.c.l.s4 1983009808
        %v570 = vunpack.c.0.s8 %v569
        %v571 = vperm.slane %v567, %v570
        %v572 = vrot.slane %v562, 4
        %v573 = vsel %vm228, %v572, %v560
        %v575 = vunpack.c.l.s4 1983009808
        %v576 = vunpack.c.0.s8 %v575
        %v577 = vperm.slane %v573, %v576
        %v578 = vsel %vm228, %v565, %v554
        %v580 = vunpack.c.l.s4 1983009808
        %v581 = vunpack.c.0.s8 %v580
        %v582 = vperm.slane %v578, %v581
        %v583 = vrot.slane %v566, 4
        %v584 = vsel %vm228, %v583, %v564
        %v586 = vunpack.c.l.s4 1983009808
        %v587 = vunpack.c.0.s8 %v586
        %v588 = vperm.slane %v584, %v587
        %v589 = vrot.slane %v577, 4
        %v590 = vsel %vm228, %v589, %v571
        %v592 = vunpack.c.l.s4 1934713408
        %v593 = vunpack.c.0.s8 %v592
        %v594 = vperm.slane %v590, %v593
        %v595 = vrot.slane %v588, 4
        %v596 = vsel %vm228, %v595, %v582
        %v598 = vunpack.c.l.s4 1934713408
        %v599 = vunpack.c.0.s8 %v598
        %v600 = vperm.slane %v596, %v599
        %v601 = vrot.slane %v600, 4
        %v602 = vsel %vm228, %v601, %v594
        %v603 = vrot.slane %v594, 4
        %v604 = vsel %vm228, %v600, %v603
        %606 = vrot.lane.b32.xlu0 %v604, 4
        %v607 = vpop.permute.xlu0 %606
        %v609 = vsel %vm324, %v602, %v607
        %610 = vst.msk [vmem:[%s218] sm:$0xff] %vm434, %v609
        %s611 = sand.u32 %s97, 1
        %s612 = scalar_lea.sflag [#allocation4], %s611
        %s613 = sand.u32 %s97, 1
        %s614 = smul.addr %s613, 8
        %s615 = scalar_lea.vmem [#allocation8], %s614
        // Predicated region
        $region45: #{tpu_custom_call.1} parent=31 // pred_check
          %p616 = pneg %p107
        $region46: #{tpu_custom_call.1} parent=31 // pred_check_branch
          %618 = sbr.rel (%p616) target = $region48
        $region47: #{tpu_custom_call.1} parent=31 // pred_region
          %620 = vsyncadd %s612, 0
          %s621 = smul.addr %s21, 8
          %s622 = scalar_lea.hbm %s3, %s621
          %s624 = sshll.u32 %s615, 4
          %s625 = int_to_ptr.vmem [resolvable:$true] %s624
          %s626 = sshll.u32 %s622, 4
          %s627 = int_to_ptr.hbm [resolvable:$true] %s626
          %629 = dma.vmem_to_hbm [thread:$0]  %s625, 128, %s627, %s612
        $region48: #{tpu_custom_call.1} parent=31 // pred_fallthru
          _
      $region32: #{tpu_custom_call.1} parent=5 // pred_fallthru
        _
      %p630 = scmp.le.s32.totalorder 2, %s16
      // Predicated region
      $region49: #{tpu_custom_call.1} parent=5 // pred_check
        %p631 = pneg %p630
      $region50: #{tpu_custom_call.1} parent=5 // pred_check_branch
        %633 = sbr.rel (%p631) target = $region52
      $region51: #{tpu_custom_call.1} parent=5 // pred_region
        %s634 = ssub.s32 %s16, 2
        // Predicated region
        $region53: #{tpu_custom_call.1} parent=51 // pred_check
          %p635 = pneg %p113
        $region54: #{tpu_custom_call.1} parent=51 // pred_check_branch
          %637 = sbr.rel (%p635) target = $region56
        $region55: #{tpu_custom_call.1} parent=51 // pred_region
          %s638 = sand.u32 %s98, 1
          %s639 = scalar_lea.sflag [#allocation4], %s638
          %s640 = sand.u32 %s98, 1
          %s641 = smul.addr %s640, 8
          %s642 = scalar_lea.vmem [#allocation8], %s641
          %644 = dma.done %s639, 128
        $region56: #{tpu_custom_call.1} parent=51 // pred_fallthru
          _
      $region52: #{tpu_custom_call.1} parent=5 // pred_fallthru
        _
    $region6: #{tpu_custom_call.1} parent=1 // loop_footer
      %s20 = sadd.s32 1, %s16
    $region7: #{tpu_custom_call.1} parent=1 // loop_footer_branch
      %15 = sbr.rel target = $region3
    $region8: #{tpu_custom_call.1} parent=1 // loop_exit
      _
    %645 = vsyncpa [#allocation3], 1
    %s646 = scalar_lea.sflag [#allocation3], 1
    %647 = vsyncpa %s646, 1
    %648 = vsyncpa [#allocation6], 1
    %649 = vsyncpa [#allocation4], 1
    %s650 = scalar_lea.sflag [#allocation4], 1
    %651 = vsyncpa %s650, 1

</llo_original>
